<compile_context>
chip_gen: v7x
topology: tpu7x:2x2x1
jax: 0.10.0
libtpu: 0.0.40
codegen_flags: <defaults>
</compile_context>

<pallas_src>
import functools

import jax
import jax.numpy as jnp
from jax import lax
from jax.experimental import pallas as pl
from jax.experimental.pallas import tpu as pltpu

_LANES = 128
_SUBLANES = 8
_SLAB = _SUBLANES * _LANES          # 1024-element alignment of the kernel path
_CHUNK_ROWS = 128                   # inner-loop chunk: 16 f32 vregs per input
_TARGET_BLOCK_BYTES = 4 << 20       # ~4 MiB per input per grid step (widest dtype)
_HARD_MAX_TILE_ROWS = 32768
_VMEM_LIMIT_CAP = 32 << 20          # safe on v5e/v6e (128 MiB) and v7x (64 MiB)


def _round_up(x, m):
    return ((x + m - 1) // m) * m


def _cdiv(a, b):
    return (a + b - 1) // b


def _default_num_slices():
    """Two slices only on 2-TensorCore chips (v7x); one on v5e/v6e."""
    try:
        kind = jax.devices()[0].device_kind.lower()
    except Exception:
        return 1
    return 2 if ("v7" in kind or "7x" in kind) else 1


def _iou_partial_kernel(x_ref, y_ref, out_ref, acc_inter, acc_total, *,
                        rows, tile_rows, chunk_rows, blocks_per_slice,
                        need_mask, unroll):
    """Per-slice accumulation of sum(x*y) and sum(x)+sum(y); emit partials."""
    s = pl.program_id(0)
    k = pl.program_id(1)

    @pl.when(k == 0)
    def _():
        acc_inter[...] = jnp.zeros_like(acc_inter)
        acc_total[...] = jnp.zeros_like(acc_total)

    # Logical (unclamped) first row of this block in the full (rows,128) slab.
    start = (s * blocks_per_slice + k) * tile_rows

    def accumulate(off, ch, masked):
        x = x_ref[pl.ds(off, ch), :].astype(jnp.float32)
        y = y_ref[pl.ds(off, ch), :].astype(jnp.float32)
        if masked:
            valid = rows - (start + off)
            rid = lax.broadcasted_iota(jnp.int32, (ch, _LANES), 0)
            keep = rid < valid
            x = jnp.where(keep, x, 0.0)
            y = jnp.where(keep, y, 0.0)
        g = ch // _SUBLANES
        xs = x.reshape(g, _SUBLANES, _LANES)
        ys = y.reshape(g, _SUBLANES, _LANES)
        # Pure-VALU adds into (8,128) accumulators; fused total update.
        acc_inter[...] += jnp.sum(xs * ys, axis=0)
        acc_total[...] = acc_total[...] + jnp.sum(xs, axis=0) + jnp.sum(ys, axis=0)

    n_full = tile_rows // chunk_rows
    rem = tile_rows - n_full * chunk_rows       # static, multiple of 8

    def run(masked):
        if n_full == 1:
            accumulate(0, chunk_rows, masked)
        elif n_full > 1:
            def body(c, carry):
                off = pl.multiple_of(c * chunk_rows, chunk_rows)
                accumulate(off, chunk_rows, masked)
                return carry
            lax.fori_loop(0, n_full, body, 0, unroll=unroll)
        if rem:
            accumulate(n_full * chunk_rows, rem, masked)

    if need_mask:
        # Only blocks that straddle/exceed `rows` pay for the masking VALU ops.
        straddles = start + tile_rows > rows

        @pl.when(straddles)
        def _():
            run(masked=True)

        @pl.when(jnp.logical_not(straddles))
        def _():
            run(masked=False)
    else:
        run(masked=False)

    @pl.when(k == pl.num_programs(1) - 1)
    def _():
        inter = jnp.sum(acc_inter[...])          # single cross-lane XLU reduce
        total = jnp.sum(acc_total[...])
        lane = lax.broadcasted_iota(jnp.int32, (_SUBLANES, 2 * _LANES), 1)
        # lanes [0,128): intersection partial; lanes [128,256): total partial
        out_ref[...] = jnp.where(lane < _LANES, inter, total)


def _kernel_partial_sums(x2, y2, *, tile_rows, num_slices):
    """Run the streaming-reduction kernel over aligned (rows,128) slabs.

    Returns (intersection, total) partial sums as float32 scalars.
    """
    assert x2.shape == y2.shape, (x2.shape, y2.shape)
    rows = x2.shape[0]
    ix = jnp.dtype(x2.dtype).itemsize
    iy = jnp.dtype(y2.dtype).itemsize

    # Byte-capped, dtype-scaled row tile (multiple of 8, never exceeding rows).
    if tile_rows is None:
        tr = _TARGET_BLOCK_BYTES // (_LANES * max(ix, iy))
    else:
        tr = int(tile_rows)
    tr = max(_SUBLANES, min(tr, _HARD_MAX_TILE_ROWS, rows))
    tr = (tr // _SUBLANES) * _SUBLANES

    chunk = min(_CHUNK_ROWS, tr)
    nblocks = _cdiv(rows, tr)

    if num_slices is None:
        num_slices = _default_num_slices()
    s_count = max(1, min(int(num_slices), nblocks))
    k_count = _cdiv(nblocks, s_count)
    need_mask = (s_count * k_count * tr) != rows
    unroll = max(1, min(8, tr // chunk))

    def in_map(s, k):
        # Clamp so redundant trailing blocks re-read a valid window; the
        # kernel masks them to zero based on the *unclamped* position.
        return (jnp.minimum(s * k_count + k, nblocks - 1), 0)

    kernel = functools.partial(
        _iou_partial_kernel, rows=rows, tile_rows=tr, chunk_rows=chunk,
        blocks_per_slice=k_count, need_mask=need_mask, unroll=unroll)

    # Raise the scoped-VMEM limit so big tiles fit on v5e (16 MiB default) as
    # well as v6e/v7x; worst-case double-buffered blocks are ~16 MiB.
    block_bytes = tr * _LANES * (ix + iy)
    vmem_limit = int(min(_VMEM_LIMIT_CAP, max(16 << 20, 2 * block_bytes + (8 << 20))))

    partials = pl.pallas_call(
        kernel,
        out_shape=jax.ShapeDtypeStruct((s_count * _SUBLANES, 2 * _LANES),
                                       jnp.float32),
        grid_spec=pltpu.PrefetchScalarGridSpec(
            num_scalar_prefetch=0,
            grid=(s_count, k_count),
            in_specs=[
                pl.BlockSpec((tr, _LANES), in_map),
                pl.BlockSpec((tr, _LANES), in_map),
            ],
            out_specs=pl.BlockSpec((_SUBLANES, 2 * _LANES),
                                   lambda s, k: (s, 0)),
            scratch_shapes=[
                pltpu.VMEM((_SUBLANES, _LANES), jnp.float32),  # inter acc
                pltpu.VMEM((_SUBLANES, _LANES), jnp.float32),  # total acc
            ],
        ),
        compiler_params=pltpu.CompilerParams(
            dimension_semantics=("parallel", "arbitrary"),
            vmem_limit_bytes=vmem_limit),
    )(x2, y2)

    p = partials.reshape(s_count, _SUBLANES, 2 * _LANES)
    return jnp.sum(p[:, 0, 0]), jnp.sum(p[:, 0, _LANES])


def iou_loss(inputs, targets, smooth=1.0, *, tile_rows=None, num_slices=None):
    """Pallas implementation of IoULoss.forward.

    inputs, targets: arrays with a leading batch dim (e.g. NCHW); only the
    first batch element is used, matching the PyTorch module.  Any dtype is
    accepted; the cast to float32 happens inside the kernel.
    Returns a float32 scalar: 1 - IoU.
    """
    xv = inputs[0].reshape(-1)
    yv = targets[0].reshape(-1)
    assert xv.shape == yv.shape, (xv.shape, yv.shape)
    n = xv.shape[0]
    smooth = jnp.float32(smooth)

    inter = jnp.float32(0.0)
    total = jnp.float32(0.0)

    # Kernel path: the 1024-element-aligned prefix (no jnp.pad copy).
    n_main = (n // _SLAB) * _SLAB
    if n_main > 0:
        rows = n_main // _LANES
        xm = xv if n_main == n else xv[:n_main]
        ym = yv if n_main == n else yv[:n_main]
        ki, kt = _kernel_partial_sums(xm.reshape(rows, _LANES),
                                      ym.reshape(rows, _LANES),
                                      tile_rows=tile_rows,
                                      num_slices=num_slices)
        inter = inter + ki
        total = total + kt

    # Sub-slab (<1024-element) ragged tail: negligible traffic, reduce in JAX.
    if n_main < n:
        tx = xv[n_main:].astype(jnp.float32)
        ty = yv[n_main:].astype(jnp.float32)
        inter = inter + jnp.sum(tx * ty)
        total = total + jnp.sum(tx + ty)

    union = total - inter
    return 1.0 - (inter + smooth) / (union + smooth)


def iou_loss_ref(inputs, targets, smooth=1.0):
    """Pure-JAX reference matching the PyTorch forward exactly."""
    x = inputs[0].reshape(-1).astype(jnp.float32)
    y = targets[0].reshape(-1).astype(jnp.float32)
    inter = jnp.sum(x * y)
    total = jnp.sum(x + y)
    union = total - inter
    return 1.0 - (inter + smooth) / (union + smooth)


if __name__ == "__main__":
    key = jax.random.PRNGKey(0)
    ks = jax.random.split(key, 10)

    def check(name, x, y, **kw):
        loss = jax.block_until_ready(iou_loss(x, y, smooth=1.0, **kw))
        ref = jax.block_until_ready(iou_loss_ref(x, y, smooth=1.0))
        assert jnp.allclose(loss, ref, rtol=1e-5, atol=1e-5), (name, loss, ref)

    # 1) Small NCHW, f32; flat length 1024 -> single-slab kernel fast path.
    shape1 = (2, 4, 16, 16)
    x1 = jax.nn.sigmoid(jax.random.normal(ks[0], shape1, dtype=jnp.float32))
    y1 = (jax.random.uniform(ks[1], shape1) > 0.5).astype(jnp.float32)
    check("f32_basic", x1, y1)

    # 2) Tiny ragged flat length (3*17*13 = 663 < 1024) -> pure-JAX tail path.
    shape2 = (2, 3, 17, 13)
    x2 = jax.nn.sigmoid(jax.random.normal(ks[2], shape2, dtype=jnp.float32))
    y2 = (jax.random.uniform(ks[3], shape2) > 0.5).astype(jnp.float32)
    check("f32_tiny_ragged", x2, y2)

    # 3) Narrow dtypes (bf16 probabilities, int8 mask), multi-block grid,
    #    forced 2 slices (exercises megacore-style split on any chip).
    shape3 = (2, 8, 64, 64)
    x3 = jax.nn.sigmoid(jax.random.normal(ks[4], shape3, dtype=jnp.float32)
                        ).astype(jnp.bfloat16)
    y3 = (jax.random.uniform(ks[5], shape3) > 0.5).astype(jnp.int8)
    check("bf16_int8", x3, y3, tile_rows=64, num_slices=2)

    # 4) Non-divisible tiling -> in-kernel masked path + clamped redundant block.
    shape4 = (2, 4, 40, 64)          # flat 10240 -> 80 rows, tile 32 -> 3 blocks
    x4 = jax.nn.sigmoid(jax.random.normal(ks[6], shape4, dtype=jnp.float32))
    y4 = (jax.random.uniform(ks[7], shape4) > 0.5).astype(jnp.float32)
    check("f32_partial_block", x4, y4, tile_rows=32, num_slices=2)

    # 5) Main slab + sub-slab tail split (3*33*33 = 3267 = 3*1024 + 195).
    shape5 = (2, 3, 33, 33)
    x5 = jax.nn.sigmoid(jax.random.normal(ks[8], shape5, dtype=jnp.float32))
    y5 = (jax.random.uniform(ks[9], shape5) > 0.5).astype(jnp.float32)
    check("f32_main_plus_tail", x5, y5)

    print("KERNEL_OK")
</pallas_src>

<mosaic_0001>
module attributes {stable_mosaic.version = 11 : i64} {
  func.func @_iou_partial_kernel(%arg0: i32, %arg1: i32, %arg2: memref<8x128xf32, #tpu.memory_space<vmem>>, %arg3: memref<8x128xf32, #tpu.memory_space<vmem>>, %arg4: memref<8x256xf32, #tpu.memory_space<vmem>>, %arg5: memref<8x128xf32, #tpu.memory_space<vmem>>, %arg6: memref<8x128xf32, #tpu.memory_space<vmem>>) attributes {dimension_semantics = [#tpu.dimension_semantics<parallel>, #tpu.dimension_semantics<arbitrary>], iteration_bounds = array<i64: 1, 1>, scalar_prefetch = 0 : i64, scratch_operands = 2 : i64, tpu.core_type = #tpu.core_type<tc>, window_params = [{transform_indices = @transform_0, window_bounds = array<i64: 8, 128>}, {transform_indices = @transform_1, window_bounds = array<i64: 8, 128>}, {transform_indices = @transform_2, window_bounds = array<i64: 8, 256>}]} {
    %c0_i32 = arith.constant 0 : i32
    %0 = arith.cmpi eq, %arg1, %c0_i32 : i32
    %1 = arith.extui %0 : i1 to i32
    %c0_i32_0 = arith.constant 0 : i32
    %2 = arith.cmpi ne, %1, %c0_i32_0 : i32
    scf.if %2 {
      %cst_16 = arith.constant 0.000000e+00 : f32
      %21 = vector.broadcast %cst_16 : f32 to vector<8x128xf32>
      %c0_17 = arith.constant 0 : index
      %c0_18 = arith.constant 0 : index
      %22 = vector.load %arg5[%c0_17, %c0_18] : memref<8x128xf32, #tpu.memory_space<vmem>>, vector<8x128xf32>
      tpu.vector_store %arg5[%c0_17, %c0_18], %21 {strides = array<i32>} : memref<8x128xf32, #tpu.memory_space<vmem>>, vector<8x128xf32>,
      %cst_19 = arith.constant 0.000000e+00 : f32
      %23 = vector.broadcast %cst_19 : f32 to vector<8x128xf32>
      %c0_20 = arith.constant 0 : index
      %c0_21 = arith.constant 0 : index
      %24 = vector.load %arg6[%c0_20, %c0_21] : memref<8x128xf32, #tpu.memory_space<vmem>>, vector<8x128xf32>
      tpu.vector_store %arg6[%c0_20, %c0_21], %23 {strides = array<i32>} : memref<8x128xf32, #tpu.memory_space<vmem>>, vector<8x128xf32>,
    } else {
    }
    %c0 = arith.constant 0 : index
    %c0_1 = arith.constant 0 : index
    %3 = vector.load %arg2[%c0, %c0_1] : memref<8x128xf32, #tpu.memory_space<vmem>>, vector<8x128xf32>
    %c0_2 = arith.constant 0 : index
    %c0_3 = arith.constant 0 : index
    %4 = vector.load %arg3[%c0_2, %c0_3] : memref<8x128xf32, #tpu.memory_space<vmem>>, vector<8x128xf32>
    %5 = vector.shape_cast %3 : vector<8x128xf32> to vector<1x8x128xf32>
    %6 = vector.shape_cast %4 : vector<8x128xf32> to vector<1x8x128xf32>
    %c0_4 = arith.constant 0 : index
    %c0_5 = arith.constant 0 : index
    %7 = vector.load %arg5[%c0_4, %c0_5] : memref<8x128xf32, #tpu.memory_space<vmem>>, vector<8x128xf32>
    %8 = arith.mulf %5, %6 : vector<1x8x128xf32>
    %cst = arith.constant dense<0.000000e+00> : vector<8x128xf32>
    %9 = vector.multi_reduction <add>, %8, %cst [0] : vector<1x8x128xf32> to vector<8x128xf32>
    %10 = arith.addf %7, %9 : vector<8x128xf32>
    %c0_6 = arith.constant 0 : index
    %c0_7 = arith.constant 0 : index
    %11 = vector.load %arg5[%c0_6, %c0_7] : memref<8x128xf32, #tpu.memory_space<vmem>>, vector<8x128xf32>
    tpu.vector_store %arg5[%c0_6, %c0_7], %10 {strides = array<i32>} : memref<8x128xf32, #tpu.memory_space<vmem>>, vector<8x128xf32>,
    %c0_8 = arith.constant 0 : index
    %c0_9 = arith.constant 0 : index
    %12 = vector.load %arg6[%c0_8, %c0_9] : memref<8x128xf32, #tpu.memory_space<vmem>>, vector<8x128xf32>
    %cst_10 = arith.constant dense<0.000000e+00> : vector<8x128xf32>
    %13 = vector.multi_reduction <add>, %5, %cst_10 [0] : vector<1x8x128xf32> to vector<8x128xf32>
    %14 = arith.addf %12, %13 : vector<8x128xf32>
    %cst_11 = arith.constant dense<0.000000e+00> : vector<8x128xf32>
    %15 = vector.multi_reduction <add>, %6, %cst_11 [0] : vector<1x8x128xf32> to vector<8x128xf32>
    %16 = arith.addf %14, %15 : vector<8x128xf32>
    %c0_12 = arith.constant 0 : index
    %c0_13 = arith.constant 0 : index
    %17 = vector.load %arg6[%c0_12, %c0_13] : memref<8x128xf32, #tpu.memory_space<vmem>>, vector<8x128xf32>
    tpu.vector_store %arg6[%c0_12, %c0_13], %16 {strides = array<i32>} : memref<8x128xf32, #tpu.memory_space<vmem>>, vector<8x128xf32>,
    %c0_i32_14 = arith.constant 0 : i32
    %18 = arith.cmpi eq, %arg1, %c0_i32_14 : i32
    %19 = arith.extui %18 : i1 to i32
    %c0_i32_15 = arith.constant 0 : i32
    %20 = arith.cmpi ne, %19, %c0_i32_15 : i32
    scf.if %20 {
      %c0_16 = arith.constant 0 : index
      %c0_17 = arith.constant 0 : index
      %21 = vector.load %arg5[%c0_16, %c0_17] : memref<8x128xf32, #tpu.memory_space<vmem>>, vector<8x128xf32>
      %22 = vector.shape_cast %21 : vector<8x128xf32> to vector<1x8x128xf32>
      %cst_18 = arith.constant dense<0.000000e+00> : vector<1xf32>
      %23 = vector.multi_reduction <add>, %22, %cst_18 [1, 2] : vector<1x8x128xf32> to vector<1xf32>
      %24 = vector.shape_cast %23 : vector<1xf32> to vector<1x1x1xf32>
      %25 = vector.extract %24[0, 0, 0] : f32 from vector<1x1x1xf32>
      %c0_19 = arith.constant 0 : index
      %c0_20 = arith.constant 0 : index
      %26 = vector.load %arg6[%c0_19, %c0_20] : memref<8x128xf32, #tpu.memory_space<vmem>>, vector<8x128xf32>
      %27 = vector.shape_cast %26 : vector<8x128xf32> to vector<1x8x128xf32>
      %cst_21 = arith.constant dense<0.000000e+00> : vector<1xf32>
      %28 = vector.multi_reduction <add>, %27, %cst_21 [1, 2] : vector<1x8x128xf32> to vector<1xf32>
      %29 = vector.shape_cast %28 : vector<1xf32> to vector<1x1x1xf32>
      %30 = vector.extract %29[0, 0, 0] : f32 from vector<1x1x1xf32>
      %31 = tpu.iota {dimensions = array<i32: 1>} : vector<8x256xi32>
      %c128_i32 = arith.constant 128 : i32
      %32 = vector.broadcast %c128_i32 : i32 to vector<8x256xi32>
      %33 = arith.cmpi slt, %31, %32 : vector<8x256xi32>
      %34 = vector.broadcast %25 : f32 to vector<8x256xf32>
      %35 = vector.broadcast %30 : f32 to vector<8x256xf32>
      %36 = arith.select %33, %34, %35 : vector<8x256xi1>, vector<8x256xf32>
      %c0_22 = arith.constant 0 : index
      %c0_23 = arith.constant 0 : index
      %37 = vector.load %arg4[%c0_22, %c0_23] : memref<8x256xf32, #tpu.memory_space<vmem>>, vector<8x256xf32>
      tpu.vector_store %arg4[%c0_22, %c0_23], %36 {strides = array<i32>} : memref<8x256xf32, #tpu.memory_space<vmem>>, vector<8x256xf32>,
    } else {
    }
    return
  }
  func.func @transform_0(%arg0: i32, %arg1: i32) -> (i32, i32) {
    %c1_i32 = arith.constant 1 : i32
    %0 = arith.muli %arg0, %c1_i32 : i32
    %1 = arith.addi %0, %arg1 : i32
    %c0_i32 = arith.constant 0 : i32
    %2 = arith.minsi %1, %c0_i32 : i32
    %c0_i32_0 = arith.constant 0 : i32
    %c0_i32_1 = arith.constant 0 : i32
    return %2, %c0_i32_0 : i32, i32
  }
  func.func @transform_1(%arg0: i32, %arg1: i32) -> (i32, i32) {
    %c1_i32 = arith.constant 1 : i32
    %0 = arith.muli %arg0, %c1_i32 : i32
    %1 = arith.addi %0, %arg1 : i32
    %c0_i32 = arith.constant 0 : i32
    %2 = arith.minsi %1, %c0_i32 : i32
    %c0_i32_0 = arith.constant 0 : i32
    %c0_i32_1 = arith.constant 0 : i32
    return %2, %c0_i32_0 : i32, i32
  }
  func.func @transform_2(%arg0: i32, %arg1: i32) -> (i32, i32) {
    %c0_i32 = arith.constant 0 : i32
    %c0_i32_0 = arith.constant 0 : i32
    return %arg0, %c0_i32 : i32, i32
  }
}

</mosaic_0001>

<llo_original>
// kernel: tpu_custom_call.1
$region0: #{tpu_custom_call.1}
  #allocation0 [shape = 'u32[]', space=smem, size = 0x4, offset = 0x4, fixed_abs, tag = 'smem constant byte address 0x4 - core index']
  #allocation1 [shape = 'u32[144,128]{1,0:T(1,128)}', space=vmem, size = 0x12000, scoped, tag = 'internal scratch']
  #allocation2 [shape = 'f32[8,128]{1,0:T(8,128)}', space=vmem, size = 0x1000, scoped, tag = 'scratch operand']
  #allocation3 [shape = 'f32[8,128]{1,0:T(8,128)}', space=vmem, size = 0x1000, scoped, tag = 'scratch operand']
  %s0 = inlined_call_operand.hbm [shape: f32[8,128], index: 0, kind: input, shape index: {}]
  %s1 = inlined_call_operand.hbm [shape: f32[8,128], index: 1, kind: input, shape index: {}]
  %s2 = inlined_call_operand.hbm [shape: f32[8,256], index: 2, kind: output, shape index: {}]
  %s3 = sld [smem:[#allocation0]]
  $region34: #{tpu_custom_call.1} parent=0
    _
  %s5 = ssub.s32 1, %s3
  %s6 = scalar_select 0, %s5, %s3
  $region1: #{tpu_custom_call.1} parent=0
    #allocation4 [shape = 'u8[4096]{0}', space=vmem, size = 0x1000, scoped, tag = 'input window, operand 0, single buffered']
    #allocation5 [shape = 's32[1]{0}', space=sflag, size = 0x4, scoped, tag = 'scoped memory for tpu_custom_call.1']
    #allocation6 [shape = 's32[1]{0}', space=sflag, size = 0x4, scoped, tag = 'scoped memory for tpu_custom_call.1']
    #allocation7 [shape = 'u8[4096]{0}', space=vmem, size = 0x1000, scoped, tag = 'input window, operand 1, single buffered']
    #allocation8 [shape = 's32[1]{0}', space=sflag, size = 0x4, scoped, tag = 'scoped memory for tpu_custom_call.1']
    #allocation9 [shape = 'u8[8192]{0}', space=vmem, size = 0x2000, scoped, tag = 'output window, operand 0, single buffered']
    %7 = vsyncpa [#allocation5], 0
    %8 = vsyncpa [#allocation8], 0
    %9 = vsyncpa [#allocation6], 0
    // Predicated region
    $region2: #{tpu_custom_call.1} parent=1 // pred_check
      _
    $region3: #{tpu_custom_call.1} parent=1 // pred_check_branch
      %11 = sbr.rel (0) target = $region5
    $region4: #{tpu_custom_call.1} parent=1 // pred_region
      %s12 = sadd.s32 0, 0
      %p13 = scmp.lt.s32.totalorder %s12, 0
      %s14 = scalar_select %p13, %s12, 0
      %s16 = ssub.s32 128, 128
      %17 = vsyncadd [#allocation5], %s16
      %s18 = smul.addr %s14, 128
      %s19 = scalar_lea.hbm %s0, %s18
      %s21 = sshll.u32 [#allocation4], 4
      %s22 = int_to_ptr.vmem [resolvable:$true] %s21
      %24 = dma.hbm_to_vmem [thread:$0]  %s19, 128, %s22, [#allocation5]
    $region5: #{tpu_custom_call.1} parent=1 // pred_fallthru
      _
    // Predicated region
    $region6: #{tpu_custom_call.1} parent=1 // pred_check
      _
    $region7: #{tpu_custom_call.1} parent=1 // pred_check_branch
      %26 = sbr.rel (0) target = $region9
    $region8: #{tpu_custom_call.1} parent=1 // pred_region
      %s27 = sadd.s32 0, 0
      %p28 = scmp.lt.s32.totalorder %s27, 0
      %s29 = scalar_select %p28, %s27, 0
      %s31 = ssub.s32 128, 128
      %32 = vsyncadd [#allocation8], %s31
      %s33 = smul.addr %s29, 128
      %s34 = scalar_lea.hbm %s1, %s33
      %s36 = sshll.u32 [#allocation7], 4
      %s37 = int_to_ptr.vmem [resolvable:$true] %s36
      %39 = dma.hbm_to_vmem [thread:$0]  %s34, 128, %s37, [#allocation8]
    $region9: #{tpu_custom_call.1} parent=1 // pred_fallthru
      _
    // Predicated region
    $region10: #{tpu_custom_call.1} parent=1 // pred_check
      _
    $region11: #{tpu_custom_call.1} parent=1 // pred_check_branch
      %41 = sbr.rel (0) target = $region13
    $region12: #{tpu_custom_call.1} parent=1 // pred_region
      %42 = dma.done [#allocation5], 128
    $region13: #{tpu_custom_call.1} parent=1 // pred_fallthru
      _
    // Predicated region
    $region14: #{tpu_custom_call.1} parent=1 // pred_check
      _
    $region15: #{tpu_custom_call.1} parent=1 // pred_check_branch
      %44 = sbr.rel (0) target = $region17
    $region16: #{tpu_custom_call.1} parent=1 // pred_region
      %45 = dma.done [#allocation8], 128
    $region17: #{tpu_custom_call.1} parent=1 // pred_fallthru
      _
    %s46 = sadd.s32 0, 0
    %p47 = scmp.lt.s32.totalorder %s46, 0
    %s48 = scalar_select %p47, %s46, 0
    %s49 = sadd.s32 0, 0
    %p50 = scmp.lt.s32.totalorder %s49, 0
    %s51 = scalar_select %p50, %s49, 0
    %p52 = scmp.eq.s32.totalorder 0, 0
    // Predicated region
    $region18: #{tpu_custom_call.1} parent=1 // pred_check
      %p53 = pneg %p52
    $region19: #{tpu_custom_call.1} parent=1 // pred_check_branch
      %55 = sbr.rel (%p53) target = $region21
    $region20: #{tpu_custom_call.1} parent=1 // pred_region
      %56 = vst [vmem:[#allocation2] sm:$0xff] 0.0
      %57 = vst [vmem:[#allocation3] sm:$0xff] 0.0
    $region21: #{tpu_custom_call.1} parent=1 // pred_fallthru
      _
    %v58 = vld [vmem:[#allocation4] sm:$0xff]
    %v59 = vld [vmem:[#allocation7] sm:$0xff]
    %v60 = vld [vmem:[#allocation2] sm:$0xff]
    %v61 = vmul.f32 %v58, %v59
    %v62 = vadd.f32 %v61, 0.0
    %v63 = vadd.f32 %v60, %v62
    %64 = vst [vmem:[#allocation2] sm:$0xff] %v63
    %v65 = vld [vmem:[#allocation3] sm:$0xff]
    %v66 = vadd.f32 %v58, 0.0
    %v67 = vadd.f32 %v65, %v66
    %v68 = vadd.f32 %v59, 0.0
    %v69 = vadd.f32 %v67, %v68
    %70 = vst [vmem:[#allocation3] sm:$0xff] %v69
    // Predicated region
    $region22: #{tpu_custom_call.1} parent=1 // pred_check
      %p71 = pneg %p52
    $region23: #{tpu_custom_call.1} parent=1 // pred_check_branch
      %73 = sbr.rel (%p71) target = $region25
    $region24: #{tpu_custom_call.1} parent=1 // pred_region
      %v74 = vld [vmem:[#allocation2] sm:$0xff]
      %75 = vadd.xlane.f32.xlu0 %v74
      %v76 = vpop.xlane.xlu0 %75
      %v77 = vrot.slane %v76, 4
      %v78 = vadd.f32 %v76, %v77
      %v79 = vrot.slane %v78, 2
      %v80 = vadd.f32 %v78, %v79
      %v81 = vrot.slane %v80, 1
      %v82 = vadd.f32 %v80, %v81
      %s83 = vtos %v82
      %v84 = vld [vmem:[#allocation3] sm:$0xff]
      %85 = vadd.xlane.f32.xlu0 %v84
      %v86 = vpop.xlane.xlu0 %85
      %v87 = vrot.slane %v86, 4
      %v88 = vadd.f32 %v86, %v87
      %v89 = vrot.slane %v88, 2
      %v90 = vadd.f32 %v88, %v89
      %v91 = vrot.slane %v90, 1
      %v92 = vadd.f32 %v90, %v91
      %s93 = vtos %v92
      %v94 = vlaneseq
      %v95 = vand.u32 %v94, 127
      %v96 = vadd.s32 %v95, 128
      %vm97 = vcmp.lt.s32.totalorder %v95, 128
      %vm98 = vcmp.lt.s32.totalorder %v96, 128
      %v99 = vstv %s83
      %v100 = vstv %s93
      %v101 = vsel %vm97, %v99, %v100
      %v102 = vsel %vm98, %v99, %v100
      %103 = vst [vmem:[#allocation9] sm:$0xff] %v101
      %104 = vst [vmem:[#allocation9 + $0x8] sm:$0xff] %v102
    $region25: #{tpu_custom_call.1} parent=1 // pred_fallthru
      _
    // Predicated region
    $region26: #{tpu_custom_call.1} parent=1 // pred_check
      _
    $region27: #{tpu_custom_call.1} parent=1 // pred_check_branch
      %106 = sbr.rel (0) target = $region29
    $region28: #{tpu_custom_call.1} parent=1 // pred_region
      %s108 = ssub.s32 256, 256
      %109 = vsyncadd [#allocation6], %s108
      %s111 = sshll.u32 [#allocation9], 4
      %s112 = int_to_ptr.vmem [resolvable:$true] %s111
      %114 = dma.vmem_to_hbm [thread:$0]  %s112, 256, %s2, [#allocation6]
    $region29: #{tpu_custom_call.1} parent=1 // pred_fallthru
      _
    // Predicated region
    $region30: #{tpu_custom_call.1} parent=1 // pred_check
      _
    $region31: #{tpu_custom_call.1} parent=1 // pred_check_branch
      %116 = sbr.rel (0) target = $region33
    $region32: #{tpu_custom_call.1} parent=1 // pred_region
      %117 = dma.done [#allocation6], 256
    $region33: #{tpu_custom_call.1} parent=1 // pred_fallthru
      _
    %118 = vsyncpa [#allocation5], 1
    %119 = vsyncpa [#allocation8], 1
    %120 = vsyncpa [#allocation6], 1

</llo_original>
